<compile_context>
chip_gen: v5e
topology: v5e:2x2
jax: 0.10.0
libtpu: 0.0.40
codegen_flags: <defaults>
</compile_context>

<pallas_src>
import functools

import jax
import jax.numpy as jnp
from jax.experimental import pallas as pl
from jax.experimental.pallas import tpu as pltpu


def _round_up(x, m):
    return ((x + m - 1) // m) * m


def _mlp_fused_kernel(*refs, num_layers):
    # refs = (x_ref, w0, b0, w1, b1, ..., w_{L-1}, b_{L-1}, o_ref)
    x_ref = refs[0]
    o_ref = refs[-1]
    wb = refs[1:-1]

    h = x_ref[...]
    for layer in range(num_layers):
        w = wb[2 * layer][...]
        b = wb[2 * layer + 1][...]          # (1, d_out) broadcasts over rows
        h = jnp.dot(h, w, preferred_element_type=jnp.float32) + b  # MXU, f32 acc
        if layer < num_layers - 1:
            h = jnp.maximum(h, 0.0)         # ReLU on VPU (hidden layers only)
    o_ref[...] = h.astype(o_ref.dtype)


def _choose_row_tile(n_rows, dims, vmem_budget_bytes=24 * 1024 * 1024):
    """Row tile: multiple of 8 sublanes, capped so double-buffered in/out tiles
    plus resident weights stay well under every generation's scoped VMEM."""
    d_in, d_out = dims[0], dims[-1]
    tm = min(512, _round_up(max(n_rows, 8), 8))
    per_row_bytes = 2 * 4 * (d_in + d_out)  # 2 buffers x f32 x (in + out) per row
    w_bytes = 4 * sum(a * b + b for a, b in zip(dims[:-1], dims[1:]))
    while tm > 8 and tm * per_row_bytes + w_bytes > vmem_budget_bytes:
        tm //= 2
    return _round_up(tm, 8)


def mlp_forward(x, params):
    """x: [..., input_dim] -> [..., output_dim], matching the PyTorch MLP."""
    lead_shape = x.shape[:-1]
    d_in = x.shape[-1]
    num_layers = len(params)
    dims = [d_in] + [w.shape[1] for w, _ in params]
    d_out = dims[-1]

    x2d = x.reshape(-1, d_in)
    n = x2d.shape[0]

    tm = _choose_row_tile(n, dims)
    n_pad = _round_up(n, tm)
    if n_pad != n:
        x2d = jnp.pad(x2d, ((0, n_pad - n), (0, 0)))
    grid = (n_pad // tm,)

    # Row-tiled activation blocks; weights/biases are full-array, grid-invariant.
    in_specs = [pl.BlockSpec((tm, d_in), lambda i: (i, 0))]
    flat_wb = []
    for w, b in params:
        in_specs.append(pl.BlockSpec(w.shape, lambda i: (0, 0)))
        in_specs.append(pl.BlockSpec(b.shape, lambda i: (0, 0)))
        flat_wb.extend((w, b))
    out_specs = pl.BlockSpec((tm, d_out), lambda i: (i, 0))

    flops = 2 * n_pad * sum(a * b for a, b in zip(dims[:-1], dims[1:]))
    bytes_accessed = 4 * (
        n_pad * d_in + n_pad * d_out
        + sum(a * b + b for a, b in zip(dims[:-1], dims[1:]))
    )

    kernel = functools.partial(_mlp_fused_kernel, num_layers=num_layers)
    out = pl.pallas_call(
        kernel,
        out_shape=jax.ShapeDtypeStruct((n_pad, d_out), x.dtype),
        grid_spec=pltpu.PrefetchScalarGridSpec(
            num_scalar_prefetch=0,
            grid=grid,
            in_specs=in_specs,
            out_specs=out_specs,
        ),
        compiler_params=pltpu.CompilerParams(
            dimension_semantics=("parallel",),
        ),
        cost_estimate=pl.CostEstimate(
            flops=flops, transcendentals=0, bytes_accessed=bytes_accessed),
    )(x2d, *flat_wb)

    if n_pad != n:
        out = out[:n]
    return out.reshape(*lead_shape, d_out)


def init_mlp_params(key, input_dim, hidden_dim, output_dim, num_layers):
    """Deterministic params mirroring nn.Linear shapes (stored as [in, out])."""
    h = [hidden_dim] * (num_layers - 1)
    dims_in = [input_dim] + h
    dims_out = h + [output_dim]
    params = []
    for n_in, n_out in zip(dims_in, dims_out):
        key, kw, kb = jax.random.split(key, 3)
        bound = 1.0 / jnp.sqrt(jnp.float32(n_in))  # PyTorch default Linear init range
        w = jax.random.uniform(kw, (n_in, n_out), jnp.float32, -bound, bound)
        b = jax.random.uniform(kb, (1, n_out), jnp.float32, -bound, bound)
        params.append((w, b))
    return params


def mlp_reference(x, params):
    """Plain-JAX reference for correctness check."""
    num_layers = len(params)
    for i, (w, b) in enumerate(params):
        x = jnp.dot(x, w) + b[0]
        if i < num_layers - 1:
            x = jnp.maximum(x, 0.0)
    return x


if __name__ == "__main__":
    # MLP(input_dim=32, hidden=32, output=16, num_layers=3) on x[2, 8, 32].
    input_dim, hidden_dim, output_dim, num_layers = 32, 32, 16, 3

    key = jax.random.PRNGKey(0)
    kx, kp = jax.random.split(key)
    x = jax.random.normal(kx, (2, 8, input_dim), jnp.float32)
    params = init_mlp_params(kp, input_dim, hidden_dim, output_dim, num_layers)

    out = mlp_forward(x, params)
    out = jax.block_until_ready(out)

    ref = mlp_reference(x, params)
    assert out.shape == (2, 8, output_dim), out.shape
    assert jnp.allclose(out, ref, atol=1e-5, rtol=1e-5), "mismatch vs reference"

    print("KERNEL_OK")
</pallas_src>

<mosaic_0001>
module attributes {stable_mosaic.version = 11 : i64} {
  func.func @_mlp_fused_kernel(%arg0: i32, %arg1: memref<16x32xf32, #tpu.memory_space<vmem>>, %arg2: memref<32x32xf32, #tpu.memory_space<vmem>>, %arg3: memref<1x32xf32, #tpu.memory_space<vmem>>, %arg4: memref<32x32xf32, #tpu.memory_space<vmem>>, %arg5: memref<1x32xf32, #tpu.memory_space<vmem>>, %arg6: memref<32x16xf32, #tpu.memory_space<vmem>>, %arg7: memref<1x16xf32, #tpu.memory_space<vmem>>, %arg8: memref<16x16xf32, #tpu.memory_space<vmem>>) attributes {dimension_semantics = [#tpu.dimension_semantics<parallel>], iteration_bounds = array<i64: 1>, scalar_prefetch = 0 : i64, scratch_operands = 0 : i64, tpu.core_type = #tpu.core_type<tc>, window_params = [{transform_indices = @transform_0, window_bounds = array<i64: 16, 32>}, {pipeline_mode = #tpu.pipeline_mode<synchronous>, transform_indices = @transform_1, window_bounds = array<i64: 32, 32>}, {pipeline_mode = #tpu.pipeline_mode<synchronous>, transform_indices = @transform_2, window_bounds = array<i64: 1, 32>}, {pipeline_mode = #tpu.pipeline_mode<synchronous>, transform_indices = @transform_3, window_bounds = array<i64: 32, 32>}, {pipeline_mode = #tpu.pipeline_mode<synchronous>, transform_indices = @transform_4, window_bounds = array<i64: 1, 32>}, {pipeline_mode = #tpu.pipeline_mode<synchronous>, transform_indices = @transform_5, window_bounds = array<i64: 32, 16>}, {pipeline_mode = #tpu.pipeline_mode<synchronous>, transform_indices = @transform_6, window_bounds = array<i64: 1, 16>}, {transform_indices = @transform_7, window_bounds = array<i64: 16, 16>}]} {
    %c0 = arith.constant 0 : index
    %c0_0 = arith.constant 0 : index
    %0 = vector.load %arg1[%c0, %c0_0] : memref<16x32xf32, #tpu.memory_space<vmem>>, vector<16x32xf32>
    %c0_1 = arith.constant 0 : index
    %c0_2 = arith.constant 0 : index
    %1 = vector.load %arg2[%c0_1, %c0_2] : memref<32x32xf32, #tpu.memory_space<vmem>>, vector<32x32xf32>
    %c0_3 = arith.constant 0 : index
    %c0_4 = arith.constant 0 : index
    %2 = vector.load %arg3[%c0_3, %c0_4] : memref<1x32xf32, #tpu.memory_space<vmem>>, vector<1x32xf32>
    %cst = arith.constant dense<0.000000e+00> : vector<16x32xf32>
    %3 = tpu.matmul %0, %1, %cst {dimension_numbers = #tpu.dot_dimension_numbers<[1], [0], [0], [1], [0, 0, 1, 1], [], []>} : vector<16x32xf32>, vector<32x32xf32>, vector<16x32xf32> -> vector<16x32xf32>
    %4 = vector.broadcast %2 : vector<1x32xf32> to vector<16x32xf32>
    %5 = arith.addf %3, %4 : vector<16x32xf32>
    %cst_5 = arith.constant 0.000000e+00 : f32
    %6 = vector.broadcast %cst_5 : f32 to vector<16x32xf32>
    %7 = arith.maximumf %5, %6 : vector<16x32xf32>
    %c0_6 = arith.constant 0 : index
    %c0_7 = arith.constant 0 : index
    %8 = vector.load %arg4[%c0_6, %c0_7] : memref<32x32xf32, #tpu.memory_space<vmem>>, vector<32x32xf32>
    %c0_8 = arith.constant 0 : index
    %c0_9 = arith.constant 0 : index
    %9 = vector.load %arg5[%c0_8, %c0_9] : memref<1x32xf32, #tpu.memory_space<vmem>>, vector<1x32xf32>
    %cst_10 = arith.constant dense<0.000000e+00> : vector<16x32xf32>
    %10 = tpu.matmul %7, %8, %cst_10 {dimension_numbers = #tpu.dot_dimension_numbers<[1], [0], [0], [1], [0, 0, 1, 1], [], []>} : vector<16x32xf32>, vector<32x32xf32>, vector<16x32xf32> -> vector<16x32xf32>
    %11 = vector.broadcast %9 : vector<1x32xf32> to vector<16x32xf32>
    %12 = arith.addf %10, %11 : vector<16x32xf32>
    %cst_11 = arith.constant 0.000000e+00 : f32
    %13 = vector.broadcast %cst_11 : f32 to vector<16x32xf32>
    %14 = arith.maximumf %12, %13 : vector<16x32xf32>
    %c0_12 = arith.constant 0 : index
    %c0_13 = arith.constant 0 : index
    %15 = vector.load %arg6[%c0_12, %c0_13] : memref<32x16xf32, #tpu.memory_space<vmem>>, vector<32x16xf32>
    %c0_14 = arith.constant 0 : index
    %c0_15 = arith.constant 0 : index
    %16 = vector.load %arg7[%c0_14, %c0_15] : memref<1x16xf32, #tpu.memory_space<vmem>>, vector<1x16xf32>
    %cst_16 = arith.constant dense<0.000000e+00> : vector<16x16xf32>
    %17 = tpu.matmul %14, %15, %cst_16 {dimension_numbers = #tpu.dot_dimension_numbers<[1], [0], [0], [1], [0, 0, 1, 1], [], []>} : vector<16x32xf32>, vector<32x16xf32>, vector<16x16xf32> -> vector<16x16xf32>
    %18 = vector.broadcast %16 : vector<1x16xf32> to vector<16x16xf32>
    %19 = arith.addf %17, %18 : vector<16x16xf32>
    %c0_17 = arith.constant 0 : index
    %c0_18 = arith.constant 0 : index
    %20 = vector.load %arg8[%c0_17, %c0_18] : memref<16x16xf32, #tpu.memory_space<vmem>>, vector<16x16xf32>
    tpu.vector_store %arg8[%c0_17, %c0_18], %19 {strides = array<i32>} : memref<16x16xf32, #tpu.memory_space<vmem>>, vector<16x16xf32>,
    return
  }
  func.func @transform_0(%arg0: i32) -> (i32, i32) {
    %c0_i32 = arith.constant 0 : i32
    %c0_i32_0 = arith.constant 0 : i32
    return %arg0, %c0_i32 : i32, i32
  }
  func.func @transform_1(%arg0: i32) -> (i32, i32) {
    %c0_i32 = arith.constant 0 : i32
    %c0_i32_0 = arith.constant 0 : i32
    %c0_i32_1 = arith.constant 0 : i32
    return %c0_i32, %c0_i32_0 : i32, i32
  }
  func.func @transform_2(%arg0: i32) -> (i32, i32) {
    %c0_i32 = arith.constant 0 : i32
    %c0_i32_0 = arith.constant 0 : i32
    %c0_i32_1 = arith.constant 0 : i32
    return %c0_i32, %c0_i32_0 : i32, i32
  }
  func.func @transform_3(%arg0: i32) -> (i32, i32) {
    %c0_i32 = arith.constant 0 : i32
    %c0_i32_0 = arith.constant 0 : i32
    %c0_i32_1 = arith.constant 0 : i32
    return %c0_i32, %c0_i32_0 : i32, i32
  }
  func.func @transform_4(%arg0: i32) -> (i32, i32) {
    %c0_i32 = arith.constant 0 : i32
    %c0_i32_0 = arith.constant 0 : i32
    %c0_i32_1 = arith.constant 0 : i32
    return %c0_i32, %c0_i32_0 : i32, i32
  }
  func.func @transform_5(%arg0: i32) -> (i32, i32) {
    %c0_i32 = arith.constant 0 : i32
    %c0_i32_0 = arith.constant 0 : i32
    %c0_i32_1 = arith.constant 0 : i32
    return %c0_i32, %c0_i32_0 : i32, i32
  }
  func.func @transform_6(%arg0: i32) -> (i32, i32) {
    %c0_i32 = arith.constant 0 : i32
    %c0_i32_0 = arith.constant 0 : i32
    %c0_i32_1 = arith.constant 0 : i32
    return %c0_i32, %c0_i32_0 : i32, i32
  }
  func.func @transform_7(%arg0: i32) -> (i32, i32) {
    %c0_i32 = arith.constant 0 : i32
    %c0_i32_0 = arith.constant 0 : i32
    return %arg0, %c0_i32 : i32, i32
  }
}

</mosaic_0001>

<llo_original>
// kernel: tpu_custom_call.1
$region0: #{tpu_custom_call.1}
  #allocation0 [shape = 'u32[]', space=smem, size = 0x4, offset = 0x4, fixed_abs, tag = 'smem constant byte address 0x4 - core index']
  #allocation1 [shape = 'u32[72,128]{1,0:T(1,128)}', space=vmem, size = 0x9000, scoped, tag = 'internal scratch']
  %s0 = inlined_call_operand.vmem [shape: f32[16,32], index: 0, kind: input, shape index: {}]
  %s1 = inlined_call_operand.vmem [shape: f32[32,32], index: 1, kind: input, shape index: {}]
  %s2 = inlined_call_operand.vmem [shape: f32[1,32], index: 2, kind: input, shape index: {}]
  %s3 = inlined_call_operand.hbm [shape: f32[32,32], index: 3, kind: input, shape index: {}]
  %s4 = inlined_call_operand.vmem [shape: f32[1,32], index: 4, kind: input, shape index: {}]
  %s5 = inlined_call_operand.vmem [shape: f32[32,16], index: 5, kind: input, shape index: {}]
  %s6 = inlined_call_operand.vmem [shape: f32[1,16], index: 6, kind: input, shape index: {}]
  %s7 = inlined_call_operand.hbm [shape: f32[16,16], index: 7, kind: output, shape index: {}]
  %s8 = sld [smem:[#allocation0]]
  $region42: #{tpu_custom_call.1} parent=0
    _
  %s10 = ssub.s32 1, %s8
  %s11 = scalar_select 0, %s10, %s8
  $region1: #{tpu_custom_call.1} parent=0
    #allocation2 [shape = 'u8[16384]{0}', space=vmem, size = 0x4000, scoped, tag = 'input window, operand 3, single buffered']
    #allocation3 [shape = 's32[1]{0}', space=sflag, size = 0x4, scoped, tag = 'scoped memory for tpu_custom_call.1']
    #allocation4 [shape = 's32[1]{0}', space=sflag, size = 0x4, scoped, tag = 'scoped memory for tpu_custom_call.1']
    #allocation5 [shape = 'u8[8192]{0}', space=vmem, size = 0x2000, scoped, tag = 'output window, operand 0, single buffered']
    %12 = vsyncpa [#allocation3], 0
    %13 = vsyncpa [#allocation4], 0
    // Predicated region
    $region2: #{tpu_custom_call.1} parent=1 // pred_check
      _
    $region3: #{tpu_custom_call.1} parent=1 // pred_check_branch
      %15 = sbr.rel (0) target = $region5
    $region4: #{tpu_custom_call.1} parent=1 // pred_region
      _
    $region5: #{tpu_custom_call.1} parent=1 // pred_fallthru
      _
    // Predicated region
    $region6: #{tpu_custom_call.1} parent=1 // pred_check
      _
    $region7: #{tpu_custom_call.1} parent=1 // pred_check_branch
      %17 = sbr.rel (0) target = $region9
    $region8: #{tpu_custom_call.1} parent=1 // pred_region
      _
    $region9: #{tpu_custom_call.1} parent=1 // pred_fallthru
      _
    // Predicated region
    $region10: #{tpu_custom_call.1} parent=1 // pred_check
      _
    $region11: #{tpu_custom_call.1} parent=1 // pred_check_branch
      %19 = sbr.rel (0) target = $region13
    $region12: #{tpu_custom_call.1} parent=1 // pred_region
      _
    $region13: #{tpu_custom_call.1} parent=1 // pred_fallthru
      _
    // Predicated region
    $region14: #{tpu_custom_call.1} parent=1 // pred_check
      _
    $region15: #{tpu_custom_call.1} parent=1 // pred_check_branch
      %21 = sbr.rel (0) target = $region17
    $region16: #{tpu_custom_call.1} parent=1 // pred_region
      %23 = vsyncadd [#allocation3], 0
      %s24 = sshll.u32 %s3, 4
      %s25 = int_to_ptr.hbm [resolvable:$true] %s24
      %s26 = sshll.u32 [#allocation2], 4
      %s27 = int_to_ptr.vmem [resolvable:$true] %s26
      %32 = dma.hbm_to_vmem [thread:$0]  %s25, 512, %s27, [#allocation3], 128, 128, 8
    $region17: #{tpu_custom_call.1} parent=1 // pred_fallthru
      _
    // Predicated region
    $region18: #{tpu_custom_call.1} parent=1 // pred_check
      _
    $region19: #{tpu_custom_call.1} parent=1 // pred_check_branch
      %34 = sbr.rel (0) target = $region21
    $region20: #{tpu_custom_call.1} parent=1 // pred_region
      _
    $region21: #{tpu_custom_call.1} parent=1 // pred_fallthru
      _
    // Predicated region
    $region22: #{tpu_custom_call.1} parent=1 // pred_check
      _
    $region23: #{tpu_custom_call.1} parent=1 // pred_check_branch
      %36 = sbr.rel (0) target = $region25
    $region24: #{tpu_custom_call.1} parent=1 // pred_region
      _
    $region25: #{tpu_custom_call.1} parent=1 // pred_fallthru
      _
    // Predicated region
    $region26: #{tpu_custom_call.1} parent=1 // pred_check
      _
    $region27: #{tpu_custom_call.1} parent=1 // pred_check_branch
      %38 = sbr.rel (0) target = $region29
    $region28: #{tpu_custom_call.1} parent=1 // pred_region
      _
    $region29: #{tpu_custom_call.1} parent=1 // pred_fallthru
      _
    // Predicated region
    $region30: #{tpu_custom_call.1} parent=1 // pred_check
      _
    $region31: #{tpu_custom_call.1} parent=1 // pred_check_branch
      %40 = sbr.rel (0) target = $region33
    $region32: #{tpu_custom_call.1} parent=1 // pred_region
      %42 = dma.done [#allocation3], 512
    $region33: #{tpu_custom_call.1} parent=1 // pred_fallthru
      _
    %v43 = vld [vmem:[%s0] sm:$0xff]
    %v44 = vld [vmem:[%s0 + $0x8] sm:$0xff]
    %v45 = vld [vmem:[%s1] sm:$0xff]
    %v46 = vld [vmem:[%s1 + $0x8] sm:$0xff]
    %v47 = vld [vmem:[%s1 + $0x10] sm:$0xff]
    %v48 = vld [vmem:[%s1 + $0x18] sm:$0xff]
    %v49 = vld [vmem:[%s2] sm:$0x1]
    %v51 = vperm.slane %v49, 0
    %vm53 = vcmask 261120
    %v55 = vsel %vm53, %v43, 0
    %v58 = vsel %vm53, %v44, 0
    %60 = vmatpush.msra.mxu0 0.0
    %61 = vmatpush.msra.mxu0 0.0
    %62 = vmatpush.msra.mxu0 0.0
    %63 = vmatpush.msra.mxu0 0.0
    %64 = vmatpush.msra.mxu0 0.0
    %65 = vmatpush.msra.mxu0 0.0
    %66 = vmatpush.msra.mxu0 0.0
    %67 = vmatpush.msra.mxu0 0.0
    %68 = vmatpush.msra.mxu0 0.0
    %69 = vmatpush.msra.mxu0 0.0
    %70 = vmatpush.msra.mxu0 0.0
    %71 = vmatpush.msra.mxu0 0.0
    %72 = vmatpush.msra.mxu0 %v48
    %73 = vmatpush.msra.mxu0 %v47
    %74 = vmatpush.msra.mxu0 %v46
    %75 = vmatpush.msra.mxu0 %v45
    %76 = vmatmul.f32.gmra.mxu0 %v55
    %v77 = vpop.f32.mrf.mxu0
    %v78 = vadd.f32 %v51, %v77
    %79 = vmatmul.f32.gmra.mxu0 %v58
    %v80 = vpop.f32.mrf.mxu0
    %v81 = vadd.f32 %v51, %v80
    %82 = vdwg.mxu0
    %v83 = vmax.f32 %v78, 0.0
    %v84 = vmax.f32 %v81, 0.0
    %v85 = vld [vmem:[#allocation2] sm:$0xff]
    %v86 = vld [vmem:[#allocation2 + $0x8] sm:$0xff]
    %v87 = vld [vmem:[#allocation2 + $0x10] sm:$0xff]
    %v88 = vld [vmem:[#allocation2 + $0x18] sm:$0xff]
    %v89 = vld [vmem:[%s4] sm:$0x1]
    %v91 = vperm.slane %v89, 0
    %v94 = vsel %vm53, %v83, 0
    %v97 = vsel %vm53, %v84, 0
    %99 = vmatpush.msra.mxu0 0.0
    %100 = vmatpush.msra.mxu0 0.0
    %101 = vmatpush.msra.mxu0 0.0
    %102 = vmatpush.msra.mxu0 0.0
    %103 = vmatpush.msra.mxu0 0.0
    %104 = vmatpush.msra.mxu0 0.0
    %105 = vmatpush.msra.mxu0 0.0
    %106 = vmatpush.msra.mxu0 0.0
    %107 = vmatpush.msra.mxu0 0.0
    %108 = vmatpush.msra.mxu0 0.0
    %109 = vmatpush.msra.mxu0 0.0
    %110 = vmatpush.msra.mxu0 0.0
    %111 = vmatpush.msra.mxu0 %v88
    %112 = vmatpush.msra.mxu0 %v87
    %113 = vmatpush.msra.mxu0 %v86
    %114 = vmatpush.msra.mxu0 %v85
    %115 = vmatmul.f32.gmra.mxu0 %v94
    %v116 = vpop.f32.mrf.mxu0
    %v117 = vadd.f32 %v91, %v116
    %118 = vmatmul.f32.gmra.mxu0 %v97
    %v119 = vpop.f32.mrf.mxu0
    %v120 = vadd.f32 %v91, %v119
    %121 = vdwg.mxu0
    %v122 = vmax.f32 %v117, 0.0
    %v123 = vmax.f32 %v120, 0.0
    %v124 = vld [vmem:[%s5] sm:$0xff]
    %v125 = vld [vmem:[%s5 + $0x8] sm:$0xff]
    %v126 = vld [vmem:[%s5 + $0x10] sm:$0xff]
    %v127 = vld [vmem:[%s5 + $0x18] sm:$0xff]
    %v128 = vld [vmem:[%s6] sm:$0x1]
    %v130 = vperm.slane %v128, 0
    %v133 = vsel %vm53, %v122, 0
    %v136 = vsel %vm53, %v123, 0
    %138 = vmatpush.msra.mxu0 0.0
    %139 = vmatpush.msra.mxu0 0.0
    %140 = vmatpush.msra.mxu0 0.0
    %141 = vmatpush.msra.mxu0 0.0
    %142 = vmatpush.msra.mxu0 0.0
    %143 = vmatpush.msra.mxu0 0.0
    %144 = vmatpush.msra.mxu0 0.0
    %145 = vmatpush.msra.mxu0 0.0
    %146 = vmatpush.msra.mxu0 0.0
    %147 = vmatpush.msra.mxu0 0.0
    %148 = vmatpush.msra.mxu0 0.0
    %149 = vmatpush.msra.mxu0 0.0
    %150 = vmatpush.msra.mxu0 %v127
    %151 = vmatpush.msra.mxu0 %v126
    %152 = vmatpush.msra.mxu0 %v125
    %153 = vmatpush.msra.mxu0 %v124
    %154 = vmatmul.f32.gmra.mxu0 %v133
    %v155 = vpop.f32.mrf.mxu0
    %v156 = vadd.f32 %v130, %v155
    %157 = vmatmul.f32.gmra.mxu0 %v136
    %v158 = vpop.f32.mrf.mxu0
    %v159 = vadd.f32 %v130, %v158
    %160 = vdwg.mxu0
    %vm161 = vcmask 130048
    %162 = vst.msk [vmem:[#allocation5] sm:$0xff] %vm161, %v156
    %163 = vst.msk [vmem:[#allocation5 + $0x8] sm:$0xff] %vm161, %v159
    // Predicated region
    $region34: #{tpu_custom_call.1} parent=1 // pred_check
      _
    $region35: #{tpu_custom_call.1} parent=1 // pred_check_branch
      %165 = sbr.rel (0) target = $region37
    $region36: #{tpu_custom_call.1} parent=1 // pred_region
      %167 = vsyncadd [#allocation4], 0
      %s168 = sshll.u32 [#allocation5], 4
      %s169 = int_to_ptr.vmem [resolvable:$true] %s168
      %s170 = sshll.u32 %s7, 4
      %s171 = int_to_ptr.hbm [resolvable:$true] %s170
      %176 = dma.vmem_to_hbm [thread:$0]  %s169, 256, %s171, [#allocation4], 128, 128, 8
    $region37: #{tpu_custom_call.1} parent=1 // pred_fallthru
      _
    // Predicated region
    $region38: #{tpu_custom_call.1} parent=1 // pred_check
      _
    $region39: #{tpu_custom_call.1} parent=1 // pred_check_branch
      %178 = sbr.rel (0) target = $region41
    $region40: #{tpu_custom_call.1} parent=1 // pred_region
      %180 = dma.done [#allocation4], 256
    $region41: #{tpu_custom_call.1} parent=1 // pred_fallthru
      _
    %181 = vsyncpa [#allocation3], 1
    %182 = vsyncpa [#allocation4], 1

</llo_original>
